<compile_context>
chip_gen: v6e
topology: v6e:2x2x1
jax: 0.10.0
libtpu: 0.0.40
codegen_flags: <defaults>
</compile_context>

<pallas_src>
import functools

import jax
import jax.numpy as jnp
from jax.experimental import pallas as pl
from jax.experimental.pallas import tpu as pltpu


def _round_up(x, m):
    return (x + m - 1) // m * m


def _cores_per_chip():
    """Best-effort TensorCore-per-chip detection (megacore: v4 / v7x)."""
    try:
        kind = jax.devices()[0].device_kind.lower()
        return 2 if ("v7" in kind or "v4" in kind) else 1
    except Exception:
        return 1


# --------------------------------------------------------------------------------------
# Kernel: one MXU matmul over the fused [W_m | W_c] slab, f32 accumulate, bias add,
# per-column select for the cov head (0.5 + sigmoid), single lane-dense store.
# --------------------------------------------------------------------------------------
def _zsl_fused_kernel(x_ref, w_ref, b_ref, out_ref, *, d_out):
    j = pl.program_id(1)                                     # N-tile index
    y = jnp.dot(x_ref[...], w_ref[...], preferred_element_type=jnp.float32)
    y = y + b_ref[...]                                       # (tb, tn) f32
    tn = y.shape[1]
    col = jax.lax.broadcasted_iota(jnp.int32, y.shape, 1) + j * tn
    out = jnp.where(col < d_out, y, 0.5 + jax.nn.sigmoid(y))
    out_ref[...] = out.astype(out_ref.dtype)


# --------------------------------------------------------------------------------------
# One-time parameter packing (hoisted out of the forward path).
# --------------------------------------------------------------------------------------
def pack_zsl_params(w_m, b_m, w_c, b_c, compute_dtype=None):
    """Fuse the two heads into one lane-padded weight slab.  Call ONCE per weight update.

    Returns (w_cat (D_in, Nf), b_cat (1, Nf) f32, d_out).
    """
    D_in, D_out = w_m.shape
    Nf = _round_up(2 * D_out, 128)
    if Nf > 2048:                       # large heads get N-tiled with tn=1024 in the kernel
        Nf = _round_up(Nf, 1024)

    if compute_dtype is None:
        # bf16 only for non-trivial weight slabs (keeps small-shape numerics exact f32).
        compute_dtype = jnp.bfloat16 if D_in * Nf >= (1 << 20) else jnp.float32

    w_cat = jnp.concatenate([w_m, w_c], axis=1).astype(compute_dtype)      # (D_in, 2*D_out)
    b_cat = jnp.concatenate(
        [jnp.asarray(b_m).reshape(1, D_out), jnp.asarray(b_c).reshape(1, D_out)], axis=1
    ).astype(jnp.float32)                                                   # (1, 2*D_out)

    w_cat = jnp.pad(w_cat, ((0, 0), (0, Nf - 2 * D_out)))
    b_cat = jnp.pad(b_cat, ((0, 0), (0, Nf - 2 * D_out)))
    return w_cat, b_cat, D_out


# --------------------------------------------------------------------------------------
# Forward pass.
# --------------------------------------------------------------------------------------
def base_zsl_forward(x, w_cat, b_cat, d_out, *, tb=None, out_dtype=None):
    """x: (B, D_in); w_cat: (D_in, Nf); b_cat: (1, Nf) f32. Returns (mean, cov)."""
    B, D_in = x.shape
    Nf = w_cat.shape[1]
    cdt = w_cat.dtype
    if out_dtype is None:
        out_dtype = jnp.bfloat16 if cdt == jnp.bfloat16 else jnp.float32
    x_in = x.astype(cdt)                # single cast to the compute dtype (f32 or bf16)

    # ---- N tiling of the fused head width (only for large heads) ----
    if Nf <= 2048:
        tn, n_tiles = Nf, 1
    else:
        tn = 1024                       # Nf is a multiple of 1024 by construction (pack)
        n_tiles = Nf // tn

    bw = jnp.dtype(cdt).itemsize
    bo = jnp.dtype(out_dtype).itemsize

    # ---- VMEM budget -> tile sizes ----
    w_resident = (n_tiles == 1)
    w_single_buf = w_resident and (D_in * tn * bw > (4 << 20))   # halve resident-slab VMEM
    w_bufs = 1 if w_single_buf else 2
    w_buf_bytes = w_bufs * D_in * tn * bw + 2 * tn * 4            # weights + dbl-buf bias
    per_row_bytes = 2 * D_in * bw + 2 * tn * bo                   # dbl-buf x tile + out tile

    TILE_BUDGET = 40 << 20              # conservative across v5e/v6e/v7x scoped VMEM
    tb_cap = max(8, min(2048, ((TILE_BUDGET - w_buf_bytes) // per_row_bytes) // 8 * 8))
    # TODO(synk): if D_in grows so large that the weight slab alone blows the budget, add
    # K-tiling (grid K axis + f32 VMEM accumulator); not needed for typical ZSL head sizes.

    cores = _cores_per_chip()
    if tb is None:
        if cores >= 2 and B >= 2 * 256 and tb_cap >= 256:
            # One big step per TensorCore (megacore) — only when each step gets >=256 rows.
            tb = min(_round_up(pl.cdiv(B, cores), 8), tb_cap)
        elif B <= tb_cap:
            tb = B                      # single batch step: no x padding, no extra steps
        else:
            tb = tb_cap                 # biggest tile that fits the VMEM budget
    else:
        tb = B if tb >= B else max(8, (int(tb) // 8) * 8)

    B_pad = _round_up(B, tb)
    if B_pad != B:
        x_in = jnp.pad(x_in, ((0, B_pad - B), (0, 0)))           # only on the ragged path
    grid = (B_pad // tb, n_tiles)

    vmem_need = w_buf_bytes + tb * per_row_bytes + (1 << 20)
    vmem_limit = int(min(56 << 20, max(vmem_need, 16 << 20)))

    # ---- BlockSpecs ----
    w_spec_kwargs = {}
    if w_single_buf:
        w_spec_kwargs["pipeline_mode"] = pl.Buffered(1)          # resident slab, 1 buffer
    in_specs = [
        pl.BlockSpec((tb, D_in), lambda i, j: (i, 0)),           # x tile (streamed)
        pl.BlockSpec((D_in, tn), lambda i, j: (0, j), **w_spec_kwargs),
        pl.BlockSpec((1, tn), lambda i, j: (0, j)),              # fused bias (f32)
    ]
    out_specs = pl.BlockSpec((tb, tn), lambda i, j: (i, j))      # fused, lane-dense output

    out_p = pl.pallas_call(
        functools.partial(_zsl_fused_kernel, d_out=d_out),
        out_shape=jax.ShapeDtypeStruct((B_pad, Nf), out_dtype),
        grid_spec=pltpu.PrefetchScalarGridSpec(
            num_scalar_prefetch=0,
            grid=grid,
            in_specs=in_specs,
            out_specs=out_specs,
        ),
        compiler_params=pltpu.CompilerParams(
            dimension_semantics=("parallel", "parallel"),
            vmem_limit_bytes=vmem_limit,
        ),
    )(x_in, w_cat, b_cat)

    # Slice batch padding + head split + lane padding off the fused result.
    mean = out_p[:B, :d_out]
    cov = out_p[:B, d_out:2 * d_out]
    return mean, cov


def base_zsl_forward_unpacked(x, w_m, b_m, w_c, b_c, **kw):
    """Convenience wrapper (packs per call — prefer pack_zsl_params once + base_zsl_forward)."""
    w_cat, b_cat, d_out = pack_zsl_params(w_m, b_m, w_c, b_c)
    return base_zsl_forward(x, w_cat, b_cat, d_out, **kw)


if __name__ == "__main__":
    # ---- small shapes consistent with the module: two Linear heads over a feature vec ----
    B, D_IN, D_OUT = 8, 32, 16

    key = jax.random.PRNGKey(0)
    k_x, k_wm, k_bm, k_wc, k_bc = jax.random.split(key, 5)

    x = jax.random.normal(k_x, (B, D_IN), dtype=jnp.float32)
    w_m = jax.random.normal(k_wm, (D_IN, D_OUT), dtype=jnp.float32) * 0.1
    b_m = jax.random.normal(k_bm, (1, D_OUT), dtype=jnp.float32) * 0.1
    w_c = jax.random.normal(k_wc, (D_IN, D_OUT), dtype=jnp.float32) * 0.1
    b_c = jax.random.normal(k_bc, (1, D_OUT), dtype=jnp.float32) * 0.1

    # Pack fused/padded weights ONCE (hoisted out of the forward path).
    w_cat, b_cat, d_out = pack_zsl_params(w_m, b_m, w_c, b_c)
    fwd = jax.jit(base_zsl_forward, static_argnames=("d_out", "tb", "out_dtype"))

    mean, cov = fwd(x, w_cat, b_cat, d_out=d_out)
    jax.block_until_ready((mean, cov))

    mean_ref = x @ w_m + b_m
    cov_ref = 0.5 + jax.nn.sigmoid(x @ w_c + b_c)
    assert mean.shape == (B, D_OUT) and cov.shape == (B, D_OUT)
    assert jnp.allclose(mean, mean_ref, atol=1e-5, rtol=1e-5)
    assert jnp.allclose(cov, cov_ref, atol=1e-5, rtol=1e-5)
    assert bool(jnp.all((cov > 0.5) & (cov < 1.5)))   # cov in (0.5, 1.5) by construction

    # ---- ragged batch, single full-batch block (no x padding) ----
    B2, D_IN2, D_OUT2 = 200, 64, 40
    k2 = jax.random.split(jax.random.PRNGKey(0), 5)
    x2 = jax.random.normal(k2[0], (B2, D_IN2), dtype=jnp.float32)
    w_m2 = jax.random.normal(k2[1], (D_IN2, D_OUT2), dtype=jnp.float32) * 0.1
    b_m2 = jax.random.normal(k2[2], (1, D_OUT2), dtype=jnp.float32) * 0.1
    w_c2 = jax.random.normal(k2[3], (D_IN2, D_OUT2), dtype=jnp.float32) * 0.1
    b_c2 = jax.random.normal(k2[4], (1, D_OUT2), dtype=jnp.float32) * 0.1

    w_cat2, b_cat2, d_out2 = pack_zsl_params(w_m2, b_m2, w_c2, b_c2)
    mean2, cov2 = fwd(x2, w_cat2, b_cat2, d_out=d_out2)
    jax.block_until_ready((mean2, cov2))
    mean2_ref = x2 @ w_m2 + b_m2
    cov2_ref = 0.5 + jax.nn.sigmoid(x2 @ w_c2 + b_c2)
    assert mean2.shape == (B2, D_OUT2) and cov2.shape == (B2, D_OUT2)
    assert jnp.allclose(mean2, mean2_ref, atol=1e-4, rtol=1e-4)
    assert jnp.allclose(cov2, cov2_ref, atol=1e-4, rtol=1e-4)

    # ---- explicit multi-step batch grid (exercises padding + multi-block pipeline) ----
    mean3, cov3 = fwd(x2, w_cat2, b_cat2, d_out=d_out2, tb=64)
    jax.block_until_ready((mean3, cov3))
    assert jnp.allclose(mean3, mean2_ref, atol=1e-4, rtol=1e-4)
    assert jnp.allclose(cov3, cov2_ref, atol=1e-4, rtol=1e-4)

    # TODO(synk): save_checkpoint (torch.save / shutil file copy) is host-side I/O,
    # not part of the forward pass — intentionally not translated.
    print("KERNEL_OK")
</pallas_src>

<mosaic_0001>
module attributes {stable_mosaic.version = 11 : i64} {
  func.func @_zsl_fused_kernel(%arg0: i32, %arg1: i32, %arg2: memref<8x32xf32, #tpu.memory_space<vmem>>, %arg3: memref<32x128xf32, #tpu.memory_space<vmem>>, %arg4: memref<1x128xf32, #tpu.memory_space<vmem>>, %arg5: memref<8x128xf32, #tpu.memory_space<vmem>>) attributes {dimension_semantics = [#tpu.dimension_semantics<parallel>, #tpu.dimension_semantics<parallel>], iteration_bounds = array<i64: 1, 1>, scalar_prefetch = 0 : i64, scratch_operands = 0 : i64, tpu.core_type = #tpu.core_type<tc>, window_params = [{transform_indices = @transform_0, window_bounds = array<i64: 8, 32>}, {transform_indices = @transform_1, window_bounds = array<i64: 32, 128>}, {transform_indices = @transform_2, window_bounds = array<i64: 1, 128>}, {transform_indices = @transform_3, window_bounds = array<i64: 8, 128>}]} {
    %c0 = arith.constant 0 : index
    %c0_0 = arith.constant 0 : index
    %0 = vector.load %arg2[%c0, %c0_0] : memref<8x32xf32, #tpu.memory_space<vmem>>, vector<8x32xf32>
    %c0_1 = arith.constant 0 : index
    %c0_2 = arith.constant 0 : index
    %1 = vector.load %arg3[%c0_1, %c0_2] : memref<32x128xf32, #tpu.memory_space<vmem>>, vector<32x128xf32>
    %cst = arith.constant dense<0.000000e+00> : vector<8x128xf32>
    %2 = tpu.matmul %0, %1, %cst {dimension_numbers = #tpu.dot_dimension_numbers<[1], [0], [0], [1], [0, 0, 1, 1], [], []>} : vector<8x32xf32>, vector<32x128xf32>, vector<8x128xf32> -> vector<8x128xf32>
    %c0_3 = arith.constant 0 : index
    %c0_4 = arith.constant 0 : index
    %3 = vector.load %arg4[%c0_3, %c0_4] : memref<1x128xf32, #tpu.memory_space<vmem>>, vector<1x128xf32>
    %4 = vector.broadcast %3 : vector<1x128xf32> to vector<8x128xf32>
    %5 = arith.addf %2, %4 : vector<8x128xf32>
    %6 = tpu.iota {dimensions = array<i32: 1>} : vector<8x128xi32>
    %c128_i32 = arith.constant 128 : i32
    %7 = arith.muli %arg1, %c128_i32 : i32
    %8 = vector.broadcast %7 : i32 to vector<8x128xi32>
    %9 = arith.addi %6, %8 : vector<8x128xi32>
    %c16_i32 = arith.constant 16 : i32
    %10 = vector.broadcast %c16_i32 : i32 to vector<8x128xi32>
    %11 = arith.cmpi slt, %9, %10 : vector<8x128xi32>
    %12 = arith.negf %5 : vector<8x128xf32>
    %13 = math.exp %12 : vector<8x128xf32>
    %cst_5 = arith.constant 1.000000e+00 : f32
    %14 = vector.broadcast %cst_5 : f32 to vector<8x128xf32>
    %15 = arith.addf %14, %13 : vector<8x128xf32>
    %16 = arith.divf %14, %15 : vector<8x128xf32>
    %cst_6 = arith.constant 5.000000e-01 : f32
    %17 = vector.broadcast %cst_6 : f32 to vector<8x128xf32>
    %18 = arith.addf %17, %16 : vector<8x128xf32>
    %19 = arith.select %11, %5, %18 : vector<8x128xi1>, vector<8x128xf32>
    %c0_7 = arith.constant 0 : index
    %c0_8 = arith.constant 0 : index
    %20 = vector.load %arg5[%c0_7, %c0_8] : memref<8x128xf32, #tpu.memory_space<vmem>>, vector<8x128xf32>
    tpu.vector_store %arg5[%c0_7, %c0_8], %19 {strides = array<i32>} : memref<8x128xf32, #tpu.memory_space<vmem>>, vector<8x128xf32>,
    return
  }
  func.func @transform_0(%arg0: i32, %arg1: i32) -> (i32, i32) {
    %c0_i32 = arith.constant 0 : i32
    %c0_i32_0 = arith.constant 0 : i32
    return %arg0, %c0_i32 : i32, i32
  }
  func.func @transform_1(%arg0: i32, %arg1: i32) -> (i32, i32) {
    %c0_i32 = arith.constant 0 : i32
    %c0_i32_0 = arith.constant 0 : i32
    return %c0_i32, %arg1 : i32, i32
  }
  func.func @transform_2(%arg0: i32, %arg1: i32) -> (i32, i32) {
    %c0_i32 = arith.constant 0 : i32
    %c0_i32_0 = arith.constant 0 : i32
    return %c0_i32, %arg1 : i32, i32
  }
  func.func @transform_3(%arg0: i32, %arg1: i32) -> (i32, i32) {
    %c0_i32 = arith.constant 0 : i32
    return %arg0, %arg1 : i32, i32
  }
}

</mosaic_0001>

<llo_original>
// kernel: base_zsl_forward.1
$region0: #{base_zsl_forward.1}
  #allocation0 [shape = 'u32[]', space=smem, size = 0x4, offset = 0x4, fixed_abs, tag = 'smem constant byte address 0x4 - core index']
  #allocation1 [shape = 'u32[144,128]{1,0:T(1,128)}', space=vmem, size = 0x12000, scoped, tag = 'internal scratch']
  %s0 = inlined_call_operand.hbm [shape: f32[8,32], index: 0, kind: input, shape index: {}]
  %s1 = inlined_call_operand.hbm [shape: f32[32,128], index: 1, kind: input, shape index: {}]
  %s2 = inlined_call_operand.vmem [shape: f32[1,128], index: 2, kind: input, shape index: {}]
  %s3 = inlined_call_operand.vmem [shape: f32[8,128], index: 3, kind: output, shape index: {}]
  %s4 = sld [smem:[#allocation0]]
  $region30: #{base_zsl_forward.1} parent=0
    _
  %s6 = ssub.s32 1, %s4
  %s7 = scalar_select 0, %s6, %s4
  $region1: #{base_zsl_forward.1} parent=0
    #allocation2 [shape = 'u8[4096]{0}', space=vmem, size = 0x1000, scoped, tag = 'input window, operand 0, single buffered']
    #allocation3 [shape = 's32[1]{0}', space=sflag, size = 0x4, scoped, tag = 'scoped memory for base_zsl_forward.1']
    #allocation4 [shape = 'u8[16384]{0}', space=vmem, size = 0x4000, scoped, tag = 'input window, operand 1, single buffered']
    #allocation5 [shape = 's32[1]{0}', space=sflag, size = 0x4, scoped, tag = 'scoped memory for base_zsl_forward.1']
    %8 = vsyncpa [#allocation3], 0
    %9 = vsyncpa [#allocation5], 0
    // Predicated region
    $region2: #{base_zsl_forward.1} parent=1 // pred_check
      _
    $region3: #{base_zsl_forward.1} parent=1 // pred_check_branch
      %11 = sbr.rel (0) target = $region5
    $region4: #{base_zsl_forward.1} parent=1 // pred_region
      %s13 = ssub.s32 128, 128
      %14 = vsyncadd [#allocation3], %s13
      %s16 = sshll.u32 [#allocation2], 4
      %s17 = int_to_ptr.vmem [resolvable:$true] %s16
      %19 = dma.hbm_to_vmem [thread:$0]  %s0, 128, %s17, [#allocation3]
    $region5: #{base_zsl_forward.1} parent=1 // pred_fallthru
      _
    // Predicated region
    $region6: #{base_zsl_forward.1} parent=1 // pred_check
      _
    $region7: #{base_zsl_forward.1} parent=1 // pred_check_branch
      %21 = sbr.rel (0) target = $region9
    $region8: #{base_zsl_forward.1} parent=1 // pred_region
      %s23 = ssub.s32 512, 512
      %24 = vsyncadd [#allocation5], %s23
      %s25 = sshll.u32 [#allocation4], 4
      %s26 = int_to_ptr.vmem [resolvable:$true] %s25
      %31 = dma.hbm_to_vmem [thread:$0]  %s1, 512, %s26, [#allocation5], 128, 128, 8
    $region9: #{base_zsl_forward.1} parent=1 // pred_fallthru
      _
    // Predicated region
    $region10: #{base_zsl_forward.1} parent=1 // pred_check
      _
    $region11: #{base_zsl_forward.1} parent=1 // pred_check_branch
      %33 = sbr.rel (0) target = $region13
    $region12: #{base_zsl_forward.1} parent=1 // pred_region
      _
    $region13: #{base_zsl_forward.1} parent=1 // pred_fallthru
      _
    // Predicated region
    $region14: #{base_zsl_forward.1} parent=1 // pred_check
      _
    $region15: #{base_zsl_forward.1} parent=1 // pred_check_branch
      %35 = sbr.rel (0) target = $region17
    $region16: #{base_zsl_forward.1} parent=1 // pred_region
      %36 = dma.done [#allocation3], 128
    $region17: #{base_zsl_forward.1} parent=1 // pred_fallthru
      _
    // Predicated region
    $region18: #{base_zsl_forward.1} parent=1 // pred_check
      _
    $region19: #{base_zsl_forward.1} parent=1 // pred_check_branch
      %38 = sbr.rel (0) target = $region21
    $region20: #{base_zsl_forward.1} parent=1 // pred_region
      %39 = dma.done [#allocation5], 512
    $region21: #{base_zsl_forward.1} parent=1 // pred_fallthru
      _
    %v40 = vld [vmem:[#allocation2] sm:$0xff]
    %v41 = vld [vmem:[#allocation4] sm:$0xff]
    %v42 = vld [vmem:[#allocation4 + $0x8] sm:$0xff]
    %v43 = vld [vmem:[#allocation4 + $0x10] sm:$0xff]
    %v44 = vld [vmem:[#allocation4 + $0x18] sm:$0xff]
    %v45 = vld [vmem:[%s2] sm:$0x1]
    %v47 = vlaneseq
    %v48 = vshrl.u32 %v47, 7
    %v49 = vsub.s32 0, %v48
    %v50 = vrot.slane %v45, %v49
    %vm52 = vcmask 261120
    %v54 = vsel %vm52, %v40, 0
    %56 = vmatprep.subr.mxu0 0.0
    %57 = vmatpush1.msra.mxu0 0.0
    %58 = vmatprep.subr.mxu0 0.0
    %59 = vmatpush1.msra.mxu0 0.0
    %60 = vmatprep.subr.mxu0 0.0
    %61 = vmatpush1.msra.mxu0 0.0
    %62 = vmatprep.subr.mxu0 0.0
    %63 = vmatpush1.msra.mxu0 0.0
    %64 = vmatprep.subr.mxu0 0.0
    %65 = vmatpush1.msra.mxu0 0.0
    %66 = vmatprep.subr.mxu0 0.0
    %67 = vmatpush1.msra.mxu0 0.0
    %68 = vmatprep.subr.mxu0 0.0
    %69 = vmatpush1.msra.mxu0 0.0
    %70 = vmatprep.subr.mxu0 0.0
    %71 = vmatpush1.msra.mxu0 0.0
    %72 = vmatprep.subr.mxu0 0.0
    %73 = vmatpush1.msra.mxu0 0.0
    %74 = vmatprep.subr.mxu0 0.0
    %75 = vmatpush1.msra.mxu0 0.0
    %76 = vmatprep.subr.mxu0 0.0
    %77 = vmatpush1.msra.mxu0 0.0
    %78 = vmatprep.subr.mxu0 0.0
    %79 = vmatpush1.msra.mxu0 0.0
    %80 = vmatprep.subr.mxu0 0.0
    %81 = vmatpush1.msra.mxu0 %v44
    %82 = vmatprep.subr.mxu0 0.0
    %83 = vmatpush1.msra.mxu0 %v43
    %84 = vmatprep.subr.mxu0 0.0
    %85 = vmatpush1.msra.mxu0 %v42
    %86 = vmatprep.subr.mxu0 0.0
    %87 = vmatpush1.msra.mxu0 %v41
    %88 = vmatprep.subr.mxu0 0.0
    %89 = vmatpush2.msra.mxu0 0.0
    %90 = vmatprep.subr.mxu0 0.0
    %91 = vmatpush2.msra.mxu0 0.0
    %92 = vmatprep.subr.mxu0 0.0
    %93 = vmatpush2.msra.mxu0 0.0
    %94 = vmatprep.subr.mxu0 0.0
    %95 = vmatpush2.msra.mxu0 0.0
    %96 = vmatprep.subr.mxu0 0.0
    %97 = vmatpush2.msra.mxu0 0.0
    %98 = vmatprep.subr.mxu0 0.0
    %99 = vmatpush2.msra.mxu0 0.0
    %100 = vmatprep.subr.mxu0 0.0
    %101 = vmatpush2.msra.mxu0 0.0
    %102 = vmatprep.subr.mxu0 0.0
    %103 = vmatpush2.msra.mxu0 0.0
    %104 = vmatprep.subr.mxu0 0.0
    %105 = vmatpush2.msra.mxu0 0.0
    %106 = vmatprep.subr.mxu0 0.0
    %107 = vmatpush2.msra.mxu0 0.0
    %108 = vmatprep.subr.mxu0 0.0
    %109 = vmatpush2.msra.mxu0 0.0
    %110 = vmatprep.subr.mxu0 0.0
    %111 = vmatpush2.msra.mxu0 0.0
    %112 = vmatprep.subr.mxu0 0.0
    %113 = vmatpush2.msra.mxu0 0.0
    %114 = vmatprep.subr.mxu0 0.0
    %115 = vmatpush2.msra.mxu0 0.0
    %116 = vmatprep.subr.mxu0 0.0
    %117 = vmatpush2.msra.mxu0 0.0
    %118 = vmatprep.subr.mxu0 0.0
    %119 = vmatpush2.msra.mxu0 0.0
    %120 = vmatprep.mubr.f32.mxu0 0.0
    %121 = vmatmul.mubr.f32.gmra.mxu0 %v54
    %v122 = vpop.f32.mrf.mxu0
    %v123 = vadd.f32 %v50, %v122
    %v124 = vpop.f32.mrf.mxu0
    %125 = vdwg.mxu0
    %v126 = vlaneseq
    %v127 = vand.u32 %v126, 127
    %s128 = smul.u32 0, 128
    %v129 = vstv %s128
    %v130 = vadd.s32 %v127, %v129
    %vm131 = vcmp.lt.s32.totalorder %v130, 16
    %v132 = vxor.u32 %v123, 2147483648
    %v133 = vmul.f32 %v132, 1.442695
    %v134 = vpow.pop %v133
    %v135 = vadd.f32 %v134, 1.0
    %v136 = vrcp.pop %v135
    %v137 = vmul.f32 1.0, %v136
    %v138 = vadd.f32 %v137, 0.5
    %v139 = vsel %vm131, %v123, %v138
    %140 = vst [vmem:[%s3] sm:$0xff] %v139
    // Predicated region
    $region22: #{base_zsl_forward.1} parent=1 // pred_check
      _
    $region23: #{base_zsl_forward.1} parent=1 // pred_check_branch
      %142 = sbr.rel (0) target = $region25
    $region24: #{base_zsl_forward.1} parent=1 // pred_region
      _
    $region25: #{base_zsl_forward.1} parent=1 // pred_fallthru
      _
    // Predicated region
    $region26: #{base_zsl_forward.1} parent=1 // pred_check
      _
    $region27: #{base_zsl_forward.1} parent=1 // pred_check_branch
      %144 = sbr.rel (0) target = $region29
    $region28: #{base_zsl_forward.1} parent=1 // pred_region
      _
    $region29: #{base_zsl_forward.1} parent=1 // pred_fallthru
      _
    %145 = vsyncpa [#allocation3], 1
    %146 = vsyncpa [#allocation5], 1

</llo_original>
